<compile_context>
chip_gen: v7x
topology: tpu7x:2x2x1
jax: 0.10.0
libtpu: 0.0.40
codegen_flags: <defaults>
</compile_context>

<pallas_src>
import jax
import jax.numpy as jnp
from jax.experimental import pallas as pl
from jax.experimental.pallas import tpu as pltpu


def fc_critic_kernel(x_ref, w1_ref, b1_ref, w2_ref, b2_ref, w3_ref, b3_ref, q_ref):
    """One batch tile (feature-major): q[0, b] = MLP(x[:, b])."""
    # ---- layer 1: h1 = relu(W1 @ x + b1)   (concat already folded into x, single K=S+A pass) --
    h1 = jnp.dot(w1_ref[...], x_ref[...], preferred_element_type=jnp.float32)  # [H1, b_tile] f32
    h1 = jnp.maximum(h1 + b1_ref[...], 0.0)            # f32 bias-add + ReLU on the VPU

    # ---- layer 2: h2 = relu(W2 @ h1 + b2) ----
    h2 = jnp.dot(w2_ref[...], h1.astype(jnp.bfloat16),
                 preferred_element_type=jnp.float32)    # [H2, b_tile] f32
    h2 = jnp.maximum(h2 + b2_ref[...], 0.0)

    # ---- head: [1, H2] @ [H2, b_tile] -> lane-dense [1, b_tile], no transpose/relayout ----
    q = jnp.dot(w3_ref[...], h2.astype(jnp.bfloat16),
                preferred_element_type=jnp.float32)     # [1, b_tile] f32
    q_ref[...] = (q + b3_ref[0]).astype(q_ref.dtype)


def fc_critic_forward(state, action, params, *, block_b=2048):
    """state: [B, S] f32, action: [B, A] f32  ->  q: [B, 1] f32."""
    (w1, b1), (w2, b2), (w3, b3) = params
    B, S = state.shape
    A = action.shape[1]
    H1, K = w1.shape            # K = S + A
    H2 = w2.shape[0]
    assert K == S + A

    # Grid-first tiling: pick the number of steps, make it even (v7x megacore balance) when >1,
    # then size the tile to minimize padding while keeping the lane axis a multiple of 128.
    n_steps = pl.cdiv(B, block_b)
    if n_steps > 1 and n_steps % 2 == 1:
        n_steps += 1
    b_tile = max(128, ((pl.cdiv(B, n_steps) + 127) // 128) * 128)
    b_pad = n_steps * b_tile

    # Feature-major bf16 activation slab [S+A, b_pad]; concat/transpose/cast/pad in one small op.
    x_t = jnp.concatenate([state, action], axis=1).T.astype(jnp.bfloat16)   # [K, B]
    if b_pad != B:
        x_t = jnp.pad(x_t, ((0, 0), (0, b_pad - B)))

    flops = 2 * b_pad * (K * H1 + H1 * H2 + H2)
    bytes_accessed = (2 * b_pad * K + 4 * b_pad
                      + 2 * (K * H1 + H1 * H2 + H2)
                      + 4 * (H1 + H2 + 1))

    q_row = pl.pallas_call(
        fc_critic_kernel,
        out_shape=jax.ShapeDtypeStruct((1, b_pad), jnp.float32),
        grid_spec=pltpu.PrefetchScalarGridSpec(
            num_scalar_prefetch=0,
            grid=(n_steps,),
            in_specs=[
                pl.BlockSpec((K, b_tile), lambda i: (0, i)),        # x^T tile (pipelined, bf16)
                pl.BlockSpec((H1, K), lambda i: (0, 0)),            # W1 [out,in], VMEM-resident
                pl.BlockSpec((H1, 1), lambda i: (0, 0)),            # b1 (f32, broadcasts on lanes)
                pl.BlockSpec((H2, H1), lambda i: (0, 0)),           # W2, resident
                pl.BlockSpec((H2, 1), lambda i: (0, 0)),            # b2 (f32)
                pl.BlockSpec((1, H2), lambda i: (0, 0)),            # w3 row, resident
                pl.BlockSpec(memory_space=pltpu.MemorySpace.SMEM),  # b3 scalar
            ],
            out_specs=pl.BlockSpec((1, b_tile), lambda i: (0, i)),  # lane-dense q row
        ),
        compiler_params=pltpu.CompilerParams(
            dimension_semantics=("parallel",)),
        cost_estimate=pl.CostEstimate(
            flops=flops, transcendentals=0, bytes_accessed=bytes_accessed),
    )(x_t, w1, b1, w2, b2, w3, b3)

    return q_row[0, :B].reshape(B, 1)


def init_fc_critic_params(key, state_size, action_size, hidden_sizes=(128, 64)):
    """nn.Linear-style init U(-1/sqrt(fan_in), 1/sqrt(fan_in)).

    Weights are stored [out, in] (native PyTorch layout) in bf16 for the MXU; biases stay f32
    and are shaped [out, 1] so they broadcast across the lane (batch) axis inside the kernel.
    b3 is a (1,) f32 scalar kept in SMEM.
    """
    sizes = [state_size + action_size] + list(hidden_sizes) + [1]
    raw = []
    for i in range(len(sizes) - 1):
        fan_in, fan_out = sizes[i], sizes[i + 1]
        key, kw, kb = jax.random.split(key, 3)
        bound = 1.0 / (fan_in ** 0.5)
        w = jax.random.uniform(kw, (fan_out, fan_in), jnp.float32, -bound, bound)
        b = jax.random.uniform(kb, (fan_out,), jnp.float32, -bound, bound)
        raw.append((w, b))

    (w1, b1), (w2, b2), (w3, b3) = raw
    return (
        (w1.astype(jnp.bfloat16), b1.reshape(-1, 1)),   # W1 [H1, S+A] bf16, b1 [H1, 1] f32
        (w2.astype(jnp.bfloat16), b2.reshape(-1, 1)),   # W2 [H2, H1] bf16, b2 [H2, 1] f32
        (w3.astype(jnp.bfloat16), b3.reshape(1)),       # w3 [1, H2] bf16,  b3 (1,) f32 (SMEM)
    )


def fc_critic_reference(state, action, params):
    """Pure-JAX reference using the same bf16-matmul / f32-accumulate math as the kernel."""
    (w1, b1), (w2, b2), (w3, b3) = params
    x = jnp.concatenate([state, action], axis=1).astype(jnp.bfloat16)
    h1 = jnp.maximum(jnp.dot(x, w1.T, preferred_element_type=jnp.float32)
                     + b1.reshape(1, -1), 0.0)
    h2 = jnp.maximum(jnp.dot(h1.astype(jnp.bfloat16), w2.T, preferred_element_type=jnp.float32)
                     + b2.reshape(1, -1), 0.0)
    return (jnp.dot(h2.astype(jnp.bfloat16), w3.T, preferred_element_type=jnp.float32)
            + b3.reshape(1, 1))


if __name__ == "__main__":
    state_size, action_size = 16, 4
    batch = 8

    key = jax.random.PRNGKey(0)
    k_state, k_action, k_params = jax.random.split(key, 3)

    state = jax.random.normal(k_state, (batch, state_size), jnp.float32)
    action = jax.random.normal(k_action, (batch, action_size), jnp.float32)
    params = init_fc_critic_params(k_params, state_size, action_size, hidden_sizes=(128, 64))

    # Small-batch path (single tile, batch padded up to one 128-lane tile).
    q = fc_critic_forward(state, action, params)
    jax.block_until_ready(q)
    q_ref = fc_critic_reference(state, action, params)
    assert q.shape == (batch, 1)
    assert jnp.allclose(q, q_ref, atol=1e-3, rtol=1e-3)

    # Ragged large-batch path (multi-step even grid + modest padding + lane-dense output blocks).
    big = 2100
    k_s2, k_a2 = jax.random.split(jax.random.PRNGKey(1))
    state2 = jax.random.normal(k_s2, (big, state_size), jnp.float32)
    action2 = jax.random.normal(k_a2, (big, action_size), jnp.float32)
    q2 = fc_critic_forward(state2, action2, params, block_b=1024)
    jax.block_until_ready(q2)
    q2_ref = fc_critic_reference(state2, action2, params)
    assert q2.shape == (big, 1)
    assert jnp.allclose(q2, q2_ref, atol=1e-3, rtol=1e-3)

    # Default (larger) tile on the same ragged batch.
    q3 = fc_critic_forward(state2, action2, params)
    jax.block_until_ready(q3)
    assert jnp.allclose(q3, q2_ref, atol=1e-3, rtol=1e-3)

    print("KERNEL_OK")
</pallas_src>

<mosaic_0001>
module attributes {stable_mosaic.version = 11 : i64} {
  func.func @fc_critic_kernel(%arg0: i32, %arg1: memref<20x128xbf16, #tpu.memory_space<vmem>>, %arg2: memref<128x20xbf16, #tpu.memory_space<vmem>>, %arg3: memref<128x1xf32, #tpu.memory_space<vmem>>, %arg4: memref<64x128xbf16, #tpu.memory_space<vmem>>, %arg5: memref<64x1xf32, #tpu.memory_space<vmem>>, %arg6: memref<1x64xbf16, #tpu.memory_space<vmem>>, %arg7: memref<1xf32, #tpu.memory_space<smem>>, %arg8: memref<1x128xf32, #tpu.memory_space<vmem>>) attributes {dimension_semantics = [#tpu.dimension_semantics<parallel>], iteration_bounds = array<i64: 1>, scalar_prefetch = 0 : i64, scratch_operands = 0 : i64, tpu.core_type = #tpu.core_type<tc>, window_params = [{transform_indices = @transform_0, window_bounds = array<i64: 20, 128>}, {pipeline_mode = #tpu.pipeline_mode<synchronous>, transform_indices = @transform_1, window_bounds = array<i64: 128, 20>}, {pipeline_mode = #tpu.pipeline_mode<synchronous>, transform_indices = @transform_2, window_bounds = array<i64: 128, 1>}, {pipeline_mode = #tpu.pipeline_mode<synchronous>, transform_indices = @transform_3, window_bounds = array<i64: 64, 128>}, {pipeline_mode = #tpu.pipeline_mode<synchronous>, transform_indices = @transform_4, window_bounds = array<i64: 64, 1>}, {pipeline_mode = #tpu.pipeline_mode<synchronous>, transform_indices = @transform_5, window_bounds = array<i64: 1, 64>}, {transform_indices = @transform_6, window_bounds = array<i64: 1>}, {transform_indices = @transform_7, window_bounds = array<i64: 1, 128>}]} {
    %c0 = arith.constant 0 : index
    %c0_0 = arith.constant 0 : index
    %0 = vector.load %arg2[%c0, %c0_0] : memref<128x20xbf16, #tpu.memory_space<vmem>>, vector<128x20xbf16>
    %c0_1 = arith.constant 0 : index
    %c0_2 = arith.constant 0 : index
    %1 = vector.load %arg1[%c0_1, %c0_2] : memref<20x128xbf16, #tpu.memory_space<vmem>>, vector<20x128xbf16>
    %cst = arith.constant dense<0.000000e+00> : vector<128x128xf32>
    %2 = tpu.matmul %0, %1, %cst {dimension_numbers = #tpu.dot_dimension_numbers<[1], [0], [0], [1], [0, 0, 1, 1], [], []>} : vector<128x20xbf16>, vector<20x128xbf16>, vector<128x128xf32> -> vector<128x128xf32>
    %c0_3 = arith.constant 0 : index
    %c0_4 = arith.constant 0 : index
    %3 = vector.load %arg3[%c0_3, %c0_4] : memref<128x1xf32, #tpu.memory_space<vmem>>, vector<128x1xf32>
    %4 = vector.broadcast %3 : vector<128x1xf32> to vector<128x128xf32>
    %5 = arith.addf %2, %4 : vector<128x128xf32>
    %cst_5 = arith.constant 0.000000e+00 : f32
    %6 = vector.broadcast %cst_5 : f32 to vector<128x128xf32>
    %7 = arith.maximumf %5, %6 : vector<128x128xf32>
    %c0_6 = arith.constant 0 : index
    %c0_7 = arith.constant 0 : index
    %8 = vector.load %arg4[%c0_6, %c0_7] : memref<64x128xbf16, #tpu.memory_space<vmem>>, vector<64x128xbf16>
    %9 = arith.truncf %7 : vector<128x128xf32> to vector<128x128xbf16>
    %cst_8 = arith.constant dense<0.000000e+00> : vector<64x128xf32>
    %10 = tpu.matmul %8, %9, %cst_8 {dimension_numbers = #tpu.dot_dimension_numbers<[1], [0], [0], [1], [0, 0, 1, 1], [], []>} : vector<64x128xbf16>, vector<128x128xbf16>, vector<64x128xf32> -> vector<64x128xf32>
    %c0_9 = arith.constant 0 : index
    %c0_10 = arith.constant 0 : index
    %11 = vector.load %arg5[%c0_9, %c0_10] : memref<64x1xf32, #tpu.memory_space<vmem>>, vector<64x1xf32>
    %12 = vector.broadcast %11 : vector<64x1xf32> to vector<64x128xf32>
    %13 = arith.addf %10, %12 : vector<64x128xf32>
    %cst_11 = arith.constant 0.000000e+00 : f32
    %14 = vector.broadcast %cst_11 : f32 to vector<64x128xf32>
    %15 = arith.maximumf %13, %14 : vector<64x128xf32>
    %c0_12 = arith.constant 0 : index
    %c0_13 = arith.constant 0 : index
    %16 = vector.load %arg6[%c0_12, %c0_13] : memref<1x64xbf16, #tpu.memory_space<vmem>>, vector<1x64xbf16>
    %17 = arith.truncf %15 : vector<64x128xf32> to vector<64x128xbf16>
    %cst_14 = arith.constant dense<0.000000e+00> : vector<1x128xf32>
    %18 = tpu.matmul %16, %17, %cst_14 {dimension_numbers = #tpu.dot_dimension_numbers<[1], [0], [0], [1], [0, 0, 1, 1], [], []>} : vector<1x64xbf16>, vector<64x128xbf16>, vector<1x128xf32> -> vector<1x128xf32>
    %c0_15 = arith.constant 0 : index
    %19 = memref.load %arg7[%c0_15] : memref<1xf32, #tpu.memory_space<smem>>
    %20 = vector.broadcast %19 : f32 to vector<1x128xf32>
    %21 = arith.addf %18, %20 : vector<1x128xf32>
    %c0_16 = arith.constant 0 : index
    %c0_17 = arith.constant 0 : index
    %22 = vector.load %arg8[%c0_16, %c0_17] : memref<1x128xf32, #tpu.memory_space<vmem>>, vector<1x128xf32>
    tpu.vector_store %arg8[%c0_16, %c0_17], %21 {strides = array<i32>} : memref<1x128xf32, #tpu.memory_space<vmem>>, vector<1x128xf32>,
    return
  }
  func.func @transform_0(%arg0: i32) -> (i32, i32) {
    %c0_i32 = arith.constant 0 : i32
    %c0_i32_0 = arith.constant 0 : i32
    return %c0_i32, %arg0 : i32, i32
  }
  func.func @transform_1(%arg0: i32) -> (i32, i32) {
    %c0_i32 = arith.constant 0 : i32
    %c0_i32_0 = arith.constant 0 : i32
    %c0_i32_1 = arith.constant 0 : i32
    return %c0_i32, %c0_i32_0 : i32, i32
  }
  func.func @transform_2(%arg0: i32) -> (i32, i32) {
    %c0_i32 = arith.constant 0 : i32
    %c0_i32_0 = arith.constant 0 : i32
    %c0_i32_1 = arith.constant 0 : i32
    return %c0_i32, %c0_i32_0 : i32, i32
  }
  func.func @transform_3(%arg0: i32) -> (i32, i32) {
    %c0_i32 = arith.constant 0 : i32
    %c0_i32_0 = arith.constant 0 : i32
    %c0_i32_1 = arith.constant 0 : i32
    return %c0_i32, %c0_i32_0 : i32, i32
  }
  func.func @transform_4(%arg0: i32) -> (i32, i32) {
    %c0_i32 = arith.constant 0 : i32
    %c0_i32_0 = arith.constant 0 : i32
    %c0_i32_1 = arith.constant 0 : i32
    return %c0_i32, %c0_i32_0 : i32, i32
  }
  func.func @transform_5(%arg0: i32) -> (i32, i32) {
    %c0_i32 = arith.constant 0 : i32
    %c0_i32_0 = arith.constant 0 : i32
    %c0_i32_1 = arith.constant 0 : i32
    return %c0_i32, %c0_i32_0 : i32, i32
  }
  func.func @transform_6(%arg0: i32) -> i32 {
    %c0_i32 = arith.constant 0 : i32
    %c0_i32_0 = arith.constant 0 : i32
    return %c0_i32 : i32
  }
  func.func @transform_7(%arg0: i32) -> (i32, i32) {
    %c0_i32 = arith.constant 0 : i32
    %c0_i32_0 = arith.constant 0 : i32
    return %c0_i32, %arg0 : i32, i32
  }
}

</mosaic_0001>

<llo_original>
// kernel: tpu_custom_call.1
$region0: #{tpu_custom_call.1}
  #allocation0 [shape = 'u32[]', space=smem, size = 0x4, offset = 0x4, fixed_abs, tag = 'smem constant byte address 0x4 - core index']
  #allocation1 [shape = 'u32[144,128]{1,0:T(1,128)}', space=vmem, size = 0x12000, scoped, tag = 'internal scratch']
  #allocation2 [shape = 'f32[1]{0:T(128)S(6)}', space=smem, size = 0x200, scoped, tag = 'scoped memory for tpu_custom_call.1']
  %s0 = inlined_call_operand.vmem [shape: bf16[20,128], index: 0, kind: input, shape index: {}]
  %s1 = inlined_call_operand.vmem [shape: bf16[128,20], index: 1, kind: input, shape index: {}]
  %s2 = inlined_call_operand.vmem [shape: f32[128,1], index: 2, kind: input, shape index: {}]
  %s3 = inlined_call_operand.vmem [shape: bf16[64,128], index: 3, kind: input, shape index: {}]
  %s4 = inlined_call_operand.vmem [shape: f32[64,1], index: 4, kind: input, shape index: {}]
  %s5 = inlined_call_operand.vmem [shape: bf16[1,64], index: 5, kind: input, shape index: {}]
  %s6 = inlined_call_operand.<no memory space> [shape: f32[1], index: 6, kind: input, shape index: {}]
  %s7 = inlined_call_operand.hbm [shape: f32[1,128], index: 7, kind: output, shape index: {}]
  %s8 = sld [smem:[#allocation0]]
  $region38: #{tpu_custom_call.1} parent=0
    _
  %s10 = ssub.s32 1, %s8
  %s11 = scalar_select 0, %s10, %s8
  %12 = sst [smem:[#allocation2]] %s6
  $region1: #{tpu_custom_call.1} parent=0
    #allocation3 [shape = 'u8[512]{0}', space=vmem, size = 0x400, scoped, tag = 'output window, operand 0, single buffered']
    #allocation4 [shape = 's32[1]{0}', space=sflag, size = 0x4, scoped, tag = 'scoped memory for tpu_custom_call.1']
    %13 = vsyncpa [#allocation4], 0
    // Predicated region
    $region2: #{tpu_custom_call.1} parent=1 // pred_check
      _
    $region3: #{tpu_custom_call.1} parent=1 // pred_check_branch
      %15 = sbr.rel (0) target = $region5
    $region4: #{tpu_custom_call.1} parent=1 // pred_region
      _
    $region5: #{tpu_custom_call.1} parent=1 // pred_fallthru
      _
    // Predicated region
    $region6: #{tpu_custom_call.1} parent=1 // pred_check
      _
    $region7: #{tpu_custom_call.1} parent=1 // pred_check_branch
      %17 = sbr.rel (0) target = $region9
    $region8: #{tpu_custom_call.1} parent=1 // pred_region
      _
    $region9: #{tpu_custom_call.1} parent=1 // pred_fallthru
      _
    // Predicated region
    $region10: #{tpu_custom_call.1} parent=1 // pred_check
      _
    $region11: #{tpu_custom_call.1} parent=1 // pred_check_branch
      %19 = sbr.rel (0) target = $region13
    $region12: #{tpu_custom_call.1} parent=1 // pred_region
      _
    $region13: #{tpu_custom_call.1} parent=1 // pred_fallthru
      _
    // Predicated region
    $region14: #{tpu_custom_call.1} parent=1 // pred_check
      _
    $region15: #{tpu_custom_call.1} parent=1 // pred_check_branch
      %21 = sbr.rel (0) target = $region17
    $region16: #{tpu_custom_call.1} parent=1 // pred_region
      _
    $region17: #{tpu_custom_call.1} parent=1 // pred_fallthru
      _
    // Predicated region
    $region18: #{tpu_custom_call.1} parent=1 // pred_check
      _
    $region19: #{tpu_custom_call.1} parent=1 // pred_check_branch
      %23 = sbr.rel (0) target = $region21
    $region20: #{tpu_custom_call.1} parent=1 // pred_region
      _
    $region21: #{tpu_custom_call.1} parent=1 // pred_fallthru
      _
    // Predicated region
    $region22: #{tpu_custom_call.1} parent=1 // pred_check
      _
    $region23: #{tpu_custom_call.1} parent=1 // pred_check_branch
      %25 = sbr.rel (0) target = $region25
    $region24: #{tpu_custom_call.1} parent=1 // pred_region
      _
    $region25: #{tpu_custom_call.1} parent=1 // pred_fallthru
      _
    // Predicated region
    $region26: #{tpu_custom_call.1} parent=1 // pred_check
      _
    $region27: #{tpu_custom_call.1} parent=1 // pred_check_branch
      %27 = sbr.rel (0) target = $region29
    $region28: #{tpu_custom_call.1} parent=1 // pred_region
      _
    $region29: #{tpu_custom_call.1} parent=1 // pred_fallthru
      _
    %v29 = vld [vmem:[%s1] sm:$0xf]
    %v30 = vld [vmem:[%s1 + $0x4] sm:$0xf]
    %v31 = vld [vmem:[%s1 + $0x8] sm:$0xf]
    %v32 = vld [vmem:[%s1 + $0xc] sm:$0xf]
    %v33 = vld [vmem:[%s1 + $0x10] sm:$0xf]
    %v34 = vld [vmem:[%s1 + $0x14] sm:$0xf]
    %v35 = vld [vmem:[%s1 + $0x18] sm:$0xf]
    %v36 = vld [vmem:[%s1 + $0x1c] sm:$0xf]
    %v37 = vld [vmem:[%s1 + $0x20] sm:$0xf]
    %v38 = vld [vmem:[%s1 + $0x24] sm:$0xf]
    %v39 = vld [vmem:[%s1 + $0x28] sm:$0xf]
    %v40 = vld [vmem:[%s1 + $0x2c] sm:$0xf]
    %v41 = vld [vmem:[%s1 + $0x30] sm:$0xf]
    %v42 = vld [vmem:[%s1 + $0x34] sm:$0xf]
    %v43 = vld [vmem:[%s1 + $0x38] sm:$0xf]
    %v44 = vld [vmem:[%s1 + $0x3c] sm:$0xf]
    %v45 = vld [vmem:[%s0] sm:$0xf]
    %v46 = vld [vmem:[%s0 + $0x4] sm:$0xf]
    %v47 = vld [vmem:[%s0 + $0x8] sm:$0x3]
    %v48 = vld [vmem:[%s2] sm:$0xff]
    %v49 = vld [vmem:[%s2 + $0x8] sm:$0xff]
    %v50 = vld [vmem:[%s2 + $0x10] sm:$0xff]
    %v51 = vld [vmem:[%s2 + $0x18] sm:$0xff]
    %v52 = vld [vmem:[%s2 + $0x20] sm:$0xff]
    %v53 = vld [vmem:[%s2 + $0x28] sm:$0xff]
    %v54 = vld [vmem:[%s2 + $0x30] sm:$0xff]
    %v55 = vld [vmem:[%s2 + $0x38] sm:$0xff]
    %v56 = vld [vmem:[%s2 + $0x40] sm:$0xff]
    %v57 = vld [vmem:[%s2 + $0x48] sm:$0xff]
    %v58 = vld [vmem:[%s2 + $0x50] sm:$0xff]
    %v59 = vld [vmem:[%s2 + $0x58] sm:$0xff]
    %v60 = vld [vmem:[%s2 + $0x60] sm:$0xff]
    %v61 = vld [vmem:[%s2 + $0x68] sm:$0xff]
    %v62 = vld [vmem:[%s2 + $0x70] sm:$0xff]
    %v63 = vld [vmem:[%s2 + $0x78] sm:$0xff]
    %65 = vset.pattern.permute.xlu0 0
    %66 = vperm.xlu0 %65, %v48
    %v67 = vpop.permute.xlu0 %66
    %70 = vset.pattern.permute.xlu0 0
    %71 = vperm.xlu0 %70, %v49
    %v72 = vpop.permute.xlu0 %71
    %75 = vset.pattern.permute.xlu0 0
    %76 = vperm.xlu0 %75, %v50
    %v77 = vpop.permute.xlu0 %76
    %80 = vset.pattern.permute.xlu0 0
    %81 = vperm.xlu0 %80, %v51
    %v82 = vpop.permute.xlu0 %81
    %85 = vset.pattern.permute.xlu0 0
    %86 = vperm.xlu0 %85, %v52
    %v87 = vpop.permute.xlu0 %86
    %90 = vset.pattern.permute.xlu0 0
    %91 = vperm.xlu0 %90, %v53
    %v92 = vpop.permute.xlu0 %91
    %95 = vset.pattern.permute.xlu0 0
    %96 = vperm.xlu0 %95, %v54
    %v97 = vpop.permute.xlu0 %96
    %100 = vset.pattern.permute.xlu0 0
    %101 = vperm.xlu0 %100, %v55
    %v102 = vpop.permute.xlu0 %101
    %105 = vset.pattern.permute.xlu0 0
    %106 = vperm.xlu0 %105, %v56
    %v107 = vpop.permute.xlu0 %106
    %110 = vset.pattern.permute.xlu0 0
    %111 = vperm.xlu0 %110, %v57
    %v112 = vpop.permute.xlu0 %111
    %115 = vset.pattern.permute.xlu0 0
    %116 = vperm.xlu0 %115, %v58
    %v117 = vpop.permute.xlu0 %116
    %120 = vset.pattern.permute.xlu0 0
    %121 = vperm.xlu0 %120, %v59
    %v122 = vpop.permute.xlu0 %121
    %125 = vset.pattern.permute.xlu0 0
    %126 = vperm.xlu0 %125, %v60
    %v127 = vpop.permute.xlu0 %126
    %130 = vset.pattern.permute.xlu0 0
    %131 = vperm.xlu0 %130, %v61
    %v132 = vpop.permute.xlu0 %131
    %135 = vset.pattern.permute.xlu0 0
    %136 = vperm.xlu0 %135, %v62
    %v137 = vpop.permute.xlu0 %136
    %140 = vset.pattern.permute.xlu0 0
    %141 = vperm.xlu0 %140, %v63
    %v142 = vpop.permute.xlu0 %141
    %v160 = vunpack.c.l.b16 %v29
    %v161 = vunpack.c.l.b16 %v30
    %v162 = vunpack.c.l.b16 %v31
    %v163 = vunpack.c.l.b16 %v32
    %v164 = vunpack.c.l.b16 %v33
    %v165 = vunpack.c.l.b16 %v34
    %v166 = vunpack.c.l.b16 %v35
    %v167 = vunpack.c.l.b16 %v36
    %v168 = vunpack.c.l.b16 %v37
    %v169 = vunpack.c.l.b16 %v38
    %v170 = vunpack.c.l.b16 %v39
    %v171 = vunpack.c.l.b16 %v40
    %v172 = vunpack.c.l.b16 %v41
    %v173 = vunpack.c.l.b16 %v42
    %v174 = vunpack.c.l.b16 %v43
    %v175 = vunpack.c.l.b16 %v44
    %v176 = vpack.c.b16 %v161, %v160
    %v177 = vpack.c.b16 %v163, %v162
    %v178 = vpack.c.b16 %v165, %v164
    %v179 = vpack.c.b16 %v167, %v166
    %v180 = vpack.c.b16 %v169, %v168
    %v181 = vpack.c.b16 %v171, %v170
    %v182 = vpack.c.b16 %v173, %v172
    %v183 = vpack.c.b16 %v175, %v174
    %v187 = vunpack.c.l.b16 %v45
    %v188 = vunpack.c.l.b16 %v46
    %v189 = vunpack.c.l.b16 %v47
    %v190 = vpack.c.b16 %v188, %v187
    %v191 = vpack.c.b16 %v189, %v189
    %vm193 = vcmask 162816
    %v195 = vsel %vm193, %v176, 0
    %v198 = vsel %vm193, %v177, 0
    %v201 = vsel %vm193, %v178, 0
    %v204 = vsel %vm193, %v179, 0
    %v207 = vsel %vm193, %v180, 0
    %v210 = vsel %vm193, %v181, 0
    %v213 = vsel %vm193, %v182, 0
    %v216 = vsel %vm193, %v183, 0
    %vm218 = vcmask 1041408
    %v220 = vsel %vm218, %v191, 0
    %222 = vmatprep.subr.bf16.mxu0 0
    %223 = vmatpush1.bf16.msra.mxu0 %v190
    %224 = vmatprep.subr.bf16.mxu0 0
    %225 = vmatpush1.bf16.msra.mxu0 %v220
    %226 = vmatprep.subr.bf16.mxu0 0
    %227 = vmatpush1.bf16.msra.mxu0 0
    %228 = vmatprep.subr.bf16.mxu0 0
    %229 = vmatpush1.bf16.msra.mxu0 0
    %230 = vmatprep.subr.bf16.mxu0 0
    %231 = vmatpush1.bf16.msra.mxu0 0
    %232 = vmatprep.subr.bf16.mxu0 0
    %233 = vmatpush1.bf16.msra.mxu0 0
    %234 = vmatprep.subr.bf16.mxu0 0
    %235 = vmatpush1.bf16.msra.mxu0 0
    %236 = vmatprep.subr.bf16.mxu0 0
    %237 = vmatpush1.bf16.msra.mxu0 0
    %238 = vmatprep.subr.bf16.mxu0 0
    %239 = vmatpush1.bf16.msra.mxu0 0
    %240 = vmatprep.subr.bf16.mxu0 0
    %241 = vmatpush1.bf16.msra.mxu0 0
    %242 = vmatprep.subr.bf16.mxu0 0
    %243 = vmatpush1.bf16.msra.mxu0 0
    %244 = vmatprep.subr.bf16.mxu0 0
    %245 = vmatpush1.bf16.msra.mxu0 0
    %246 = vmatprep.subr.bf16.mxu0 0
    %247 = vmatpush1.bf16.msra.mxu0 0
    %248 = vmatprep.subr.bf16.mxu0 0
    %249 = vmatpush1.bf16.msra.mxu0 0
    %250 = vmatprep.subr.bf16.mxu0 0
    %251 = vmatpush1.bf16.msra.mxu0 0
    %252 = vmatprep.subr.bf16.mxu0 0
    %253 = vmatpush1.bf16.msra.mxu0 0
    %254 = vmatprep.mubr.bf16.mxu0 0
    %255 = vmatmul.mubr.bf16.gmra.mrb[0].mxu0 %v195
    %v256 = vpop.f32.mrb[0].mxu0
    %v257 = vadd.f32 %v67, %v256
    %v258 = vpop.f32.mrb[0].mxu0
    %v259 = vpop.f32.mrb[0].mxu0
    %v260 = vadd.f32 %v72, %v259
    %v261 = vpop.f32.mrb[0].mxu0
    %262 = vmatprep.mubr.bf16.mxu0 0
    %263 = vmatmul.mubr.bf16.gmra.mrb[0].mxu0 %v198
    %v264 = vpop.f32.mrb[0].mxu0
    %v265 = vadd.f32 %v77, %v264
    %v266 = vpop.f32.mrb[0].mxu0
    %v267 = vpop.f32.mrb[0].mxu0
    %v268 = vadd.f32 %v82, %v267
    %v269 = vpop.f32.mrb[0].mxu0
    %270 = vmatprep.mubr.bf16.mxu0 0
    %271 = vmatmul.mubr.bf16.gmra.mrb[0].mxu0 %v201
    %v272 = vpop.f32.mrb[0].mxu0
    %v273 = vadd.f32 %v87, %v272
    %v274 = vpop.f32.mrb[0].mxu0
    %v275 = vpop.f32.mrb[0].mxu0
    %v276 = vadd.f32 %v92, %v275
    %v277 = vpop.f32.mrb[0].mxu0
    %278 = vmatprep.mubr.bf16.mxu0 0
    %279 = vmatmul.mubr.bf16.gmra.mrb[0].mxu0 %v204
    %v280 = vpop.f32.mrb[0].mxu0
    %v281 = vadd.f32 %v97, %v280
    %v282 = vpop.f32.mrb[0].mxu0
    %v283 = vpop.f32.mrb[0].mxu0
    %v284 = vadd.f32 %v102, %v283
    %v285 = vpop.f32.mrb[0].mxu0
    %286 = vmatprep.mubr.bf16.mxu0 0
    %287 = vmatmul.mubr.bf16.gmra.mrb[0].mxu0 %v207
    %v288 = vpop.f32.mrb[0].mxu0
    %v289 = vadd.f32 %v107, %v288
    %v290 = vpop.f32.mrb[0].mxu0
    %v291 = vpop.f32.mrb[0].mxu0
    %v292 = vadd.f32 %v112, %v291
    %v293 = vpop.f32.mrb[0].mxu0
    %294 = vmatprep.mubr.bf16.mxu0 0
    %295 = vmatmul.mubr.bf16.gmra.mrb[0].mxu0 %v210
    %v296 = vpop.f32.mrb[0].mxu0
    %v297 = vadd.f32 %v117, %v296
    %v298 = vpop.f32.mrb[0].mxu0
    %v299 = vpop.f32.mrb[0].mxu0
    %v300 = vadd.f32 %v122, %v299
    %v301 = vpop.f32.mrb[0].mxu0
    %302 = vmatprep.mubr.bf16.mxu0 0
    %303 = vmatmul.mubr.bf16.gmra.mrb[0].mxu0 %v213
    %v304 = vpop.f32.mrb[0].mxu0
    %v305 = vadd.f32 %v127, %v304
    %v306 = vpop.f32.mrb[0].mxu0
    %v307 = vpop.f32.mrb[0].mxu0
    %v308 = vadd.f32 %v132, %v307
    %v309 = vpop.f32.mrb[0].mxu0
    %310 = vmatprep.mubr.bf16.mxu0 0
    %311 = vmatmul.mubr.bf16.gmra.mrb[0].mxu0 %v216
    %v312 = vpop.f32.mrb[0].mxu0
    %v313 = vadd.f32 %v137, %v312
    %v314 = vpop.f32.mrb[0].mxu0
    %v315 = vpop.f32.mrb[0].mxu0
    %v316 = vadd.f32 %v142, %v315
    %v317 = vpop.f32.mrb[0].mxu0
    %318 = vdwg.mxu0
    %v319 = vmax.f32 %v257, 0.0
    %v320 = vmax.f32 %v260, 0.0
    %v321 = vmax.f32 %v265, 0.0
    %v322 = vmax.f32 %v268, 0.0
    %v323 = vmax.f32 %v273, 0.0
    %v324 = vmax.f32 %v276, 0.0
    %v325 = vmax.f32 %v281, 0.0
    %v326 = vmax.f32 %v284, 0.0
    %v327 = vmax.f32 %v289, 0.0
    %v328 = vmax.f32 %v292, 0.0
    %v329 = vmax.f32 %v297, 0.0
    %v330 = vmax.f32 %v300, 0.0
    %v331 = vmax.f32 %v305, 0.0
    %v332 = vmax.f32 %v308, 0.0
    %v333 = vmax.f32 %v313, 0.0
    %v334 = vmax.f32 %v316, 0.0
    %v335 = vld [vmem:[%s3] sm:$0xf]
    %v336 = vld [vmem:[%s3 + $0x4] sm:$0xf]
    %v337 = vld [vmem:[%s3 + $0x8] sm:$0xf]
    %v338 = vld [vmem:[%s3 + $0xc] sm:$0xf]
    %v339 = vld [vmem:[%s3 + $0x10] sm:$0xf]
    %v340 = vld [vmem:[%s3 + $0x14] sm:$0xf]
    %v341 = vld [vmem:[%s3 + $0x18] sm:$0xf]
    %v342 = vld [vmem:[%s3 + $0x1c] sm:$0xf]
    %v343 = vpack.c.bf16 %v320, %v319
    %v344 = vpack.c.bf16 %v322, %v321
    %v345 = vpack.c.bf16 %v324, %v323
    %v346 = vpack.c.bf16 %v326, %v325
    %v347 = vpack.c.bf16 %v328, %v327
    %v348 = vpack.c.bf16 %v330, %v329
    %v349 = vpack.c.bf16 %v332, %v331
    %v350 = vpack.c.bf16 %v334, %v333
    %v351 = vld [vmem:[%s4] sm:$0xff]
    %v352 = vld [vmem:[%s4 + $0x8] sm:$0xff]
    %v353 = vld [vmem:[%s4 + $0x10] sm:$0xff]
    %v354 = vld [vmem:[%s4 + $0x18] sm:$0xff]
    %v355 = vld [vmem:[%s4 + $0x20] sm:$0xff]
    %v356 = vld [vmem:[%s4 + $0x28] sm:$0xff]
    %v357 = vld [vmem:[%s4 + $0x30] sm:$0xff]
    %v358 = vld [vmem:[%s4 + $0x38] sm:$0xff]
    %360 = vset.pattern.permute.xlu0 0
    %361 = vperm.xlu0 %360, %v351
    %v362 = vpop.permute.xlu0 %361
    %365 = vset.pattern.permute.xlu0 0
    %366 = vperm.xlu0 %365, %v352
    %v367 = vpop.permute.xlu0 %366
    %370 = vset.pattern.permute.xlu0 0
    %371 = vperm.xlu0 %370, %v353
    %v372 = vpop.permute.xlu0 %371
    %375 = vset.pattern.permute.xlu0 0
    %376 = vperm.xlu0 %375, %v354
    %v377 = vpop.permute.xlu0 %376
    %380 = vset.pattern.permute.xlu0 0
    %381 = vperm.xlu0 %380, %v355
    %v382 = vpop.permute.xlu0 %381
    %385 = vset.pattern.permute.xlu0 0
    %386 = vperm.xlu0 %385, %v356
    %v387 = vpop.permute.xlu0 %386
    %390 = vset.pattern.permute.xlu0 0
    %391 = vperm.xlu0 %390, %v357
    %v392 = vpop.permute.xlu0 %391
    %395 = vset.pattern.permute.xlu0 0
    %396 = vperm.xlu0 %395, %v358
    %v397 = vpop.permute.xlu0 %396
    %v407 = vunpack.c.l.b16 %v335
    %v408 = vunpack.c.l.b16 %v336
    %v409 = vunpack.c.l.b16 %v337
    %v410 = vunpack.c.l.b16 %v338
    %v411 = vunpack.c.l.b16 %v339
    %v412 = vunpack.c.l.b16 %v340
    %v413 = vunpack.c.l.b16 %v341
    %v414 = vunpack.c.l.b16 %v342
    %v415 = vpack.c.b16 %v408, %v407
    %v416 = vpack.c.b16 %v410, %v409
    %v417 = vpack.c.b16 %v412, %v411
    %v418 = vpack.c.b16 %v414, %v413
    %423 = vmatprep.subr.bf16.mxu0 0
    %424 = vmatpush1.bf16.msra.mxu0 %v343
    %425 = vmatprep.subr.bf16.mxu0 0
    %426 = vmatpush1.bf16.msra.mxu0 %v344
    %427 = vmatprep.subr.bf16.mxu0 0
    %428 = vmatpush1.bf16.msra.mxu0 %v345
    %429 = vmatprep.subr.bf16.mxu0 0
    %430 = vmatpush1.bf16.msra.mxu0 %v346
    %431 = vmatprep.subr.bf16.mxu0 0
    %432 = vmatpush1.bf16.msra.mxu0 %v347
    %433 = vmatprep.subr.bf16.mxu0 0
    %434 = vmatpush1.bf16.msra.mxu0 %v348
    %435 = vmatprep.subr.bf16.mxu0 0
    %436 = vmatpush1.bf16.msra.mxu0 %v349
    %437 = vmatprep.subr.bf16.mxu0 0
    %438 = vmatpush1.bf16.msra.mxu0 %v350
    %439 = vmatprep.subr.bf16.mxu0 0
    %440 = vmatpush1.bf16.msra.mxu0 0
    %441 = vmatprep.subr.bf16.mxu0 0
    %442 = vmatpush1.bf16.msra.mxu0 0
    %443 = vmatprep.subr.bf16.mxu0 0
    %444 = vmatpush1.bf16.msra.mxu0 0
    %445 = vmatprep.subr.bf16.mxu0 0
    %446 = vmatpush1.bf16.msra.mxu0 0
    %447 = vmatprep.subr.bf16.mxu0 0
    %448 = vmatpush1.bf16.msra.mxu0 0
    %449 = vmatprep.subr.bf16.mxu0 0
    %450 = vmatpush1.bf16.msra.mxu0 0
    %451 = vmatprep.subr.bf16.mxu0 0
    %452 = vmatpush1.bf16.msra.mxu0 0
    %453 = vmatprep.subr.bf16.mxu0 0
    %454 = vmatpush1.bf16.msra.mxu0 0
    %455 = vmatprep.mubr.bf16.mxu0 0
    %456 = vmatmul.mubr.bf16.gmra.mrb[0].mxu0 %v415
    %v457 = vpop.f32.mrb[0].mxu0
    %v458 = vadd.f32 %v362, %v457
    %v459 = vpop.f32.mrb[0].mxu0
    %v460 = vpop.f32.mrb[0].mxu0
    %v461 = vadd.f32 %v367, %v460
    %v462 = vpop.f32.mrb[0].mxu0
    %463 = vmatprep.mubr.bf16.mxu0 0
    %464 = vmatmul.mubr.bf16.gmra.mrb[0].mxu0 %v416
    %v465 = vpop.f32.mrb[0].mxu0
    %v466 = vadd.f32 %v372, %v465
    %v467 = vpop.f32.mrb[0].mxu0
    %v468 = vpop.f32.mrb[0].mxu0
    %v469 = vadd.f32 %v377, %v468
    %v470 = vpop.f32.mrb[0].mxu0
    %471 = vmatprep.mubr.bf16.mxu0 0
    %472 = vmatmul.mubr.bf16.gmra.mrb[0].mxu0 %v417
    %v473 = vpop.f32.mrb[0].mxu0
    %v474 = vadd.f32 %v382, %v473
    %v475 = vpop.f32.mrb[0].mxu0
    %v476 = vpop.f32.mrb[0].mxu0
    %v477 = vadd.f32 %v387, %v476
    %v478 = vpop.f32.mrb[0].mxu0
    %479 = vmatprep.mubr.bf16.mxu0 0
    %480 = vmatmul.mubr.bf16.gmra.mrb[0].mxu0 %v418
    %v481 = vpop.f32.mrb[0].mxu0
    %v482 = vadd.f32 %v392, %v481
    %v483 = vpop.f32.mrb[0].mxu0
    %v484 = vpop.f32.mrb[0].mxu0
    %v485 = vadd.f32 %v397, %v484
    %v486 = vpop.f32.mrb[0].mxu0
    %487 = vdwg.mxu0
    %v488 = vmax.f32 %v458, 0.0
    %v489 = vmax.f32 %v461, 0.0
    %v490 = vmax.f32 %v466, 0.0
    %v491 = vmax.f32 %v469, 0.0
    %v492 = vmax.f32 %v474, 0.0
    %v493 = vmax.f32 %v477, 0.0
    %v494 = vmax.f32 %v482, 0.0
    %v495 = vmax.f32 %v485, 0.0
    %v496 = vld [vmem:[%s5] sm:$0x1]
    %v497 = vpack.c.bf16 %v489, %v488
    %v498 = vpack.c.bf16 %v491, %v490
    %v499 = vpack.c.bf16 %v493, %v492
    %v500 = vpack.c.bf16 %v495, %v494
    %s501 = sld [smem:[#allocation2]]
    %v502 = vstv %s501
    %vm503 = vcmask 523264
    %v505 = vsel %vm503, %v496, 0
    %507 = vmatprep.subr.bf16.mxu0 0
    %508 = vmatpush1.bf16.msra.mxu0 %v497
    %509 = vmatprep.subr.bf16.mxu0 0
    %510 = vmatpush1.bf16.msra.mxu0 %v498
    %511 = vmatprep.subr.bf16.mxu0 0
    %512 = vmatpush1.bf16.msra.mxu0 %v499
    %513 = vmatprep.subr.bf16.mxu0 0
    %514 = vmatpush1.bf16.msra.mxu0 %v500
    %515 = vmatprep.subr.bf16.mxu0 0
    %516 = vmatpush1.bf16.msra.mxu0 0
    %517 = vmatprep.subr.bf16.mxu0 0
    %518 = vmatpush1.bf16.msra.mxu0 0
    %519 = vmatprep.subr.bf16.mxu0 0
    %520 = vmatpush1.bf16.msra.mxu0 0
    %521 = vmatprep.subr.bf16.mxu0 0
    %522 = vmatpush1.bf16.msra.mxu0 0
    %523 = vmatprep.subr.bf16.mxu0 0
    %524 = vmatpush1.bf16.msra.mxu0 0
    %525 = vmatprep.subr.bf16.mxu0 0
    %526 = vmatpush1.bf16.msra.mxu0 0
    %527 = vmatprep.subr.bf16.mxu0 0
    %528 = vmatpush1.bf16.msra.mxu0 0
    %529 = vmatprep.subr.bf16.mxu0 0
    %530 = vmatpush1.bf16.msra.mxu0 0
    %531 = vmatprep.subr.bf16.mxu0 0
    %532 = vmatpush1.bf16.msra.mxu0 0
    %533 = vmatprep.subr.bf16.mxu0 0
    %534 = vmatpush1.bf16.msra.mxu0 0
    %535 = vmatprep.subr.bf16.mxu0 0
    %536 = vmatpush1.bf16.msra.mxu0 0
    %537 = vmatprep.subr.bf16.mxu0 0
    %538 = vmatpush1.bf16.msra.mxu0 0
    %539 = vmatprep.mubr.bf16.mxu0 0
    %540 = vmatmul.mubr.bf16.gmra.mrb[0].mxu0 %v505
    %v541 = vpop.f32.mrb[0].mxu0
    %v542 = vadd.f32 %v502, %v541
    %v543 = vpop.f32.mrb[0].mxu0
    %v544 = vpop.f32.mrb[0].mxu0
    %v545 = vpop.f32.mrb[0].mxu0
    %546 = vdwg.mxu0
    %547 = vst [vmem:[#allocation3] sm:$0x1] %v542
    // Predicated region
    $region30: #{tpu_custom_call.1} parent=1 // pred_check
      _
    $region31: #{tpu_custom_call.1} parent=1 // pred_check_branch
      %549 = sbr.rel (0) target = $region33
    $region32: #{tpu_custom_call.1} parent=1 // pred_region
      %s551 = ssub.s32 16, 16
      %552 = vsyncadd [#allocation4], %s551
      %s554 = sshll.u32 [#allocation3], 4
      %s555 = int_to_ptr.vmem [resolvable:$true] %s554
      %557 = dma.vmem_to_hbm [thread:$0]  %s555, 16, %s7, [#allocation4]
    $region33: #{tpu_custom_call.1} parent=1 // pred_fallthru
      _
    // Predicated region
    $region34: #{tpu_custom_call.1} parent=1 // pred_check
      _
    $region35: #{tpu_custom_call.1} parent=1 // pred_check_branch
      %559 = sbr.rel (0) target = $region37
    $region36: #{tpu_custom_call.1} parent=1 // pred_region
      %560 = dma.done [#allocation4], 16
    $region37: #{tpu_custom_call.1} parent=1 // pred_fallthru
      _
    %561 = vsyncpa [#allocation4], 1

</llo_original>
